<compile_context>
chip_gen: v5e
topology: v5e:2x2
jax: 0.10.0
libtpu: 0.0.40
codegen_flags: <defaults>
</compile_context>

<pallas_src>
import jax
import jax.numpy as jnp
import numpy as np
from jax.experimental import pallas as pl
from jax.experimental.pallas import tpu as pltpu


def gru_kernel(gi_ref, whh_ref, bhn_ref, last_ref, out_ref):
    """Single invocation per batch tile: full-time-range GRU recurrence.

    gi_ref   : (T, BT, 3H) f32  precomputed x@W_ih^T with b_ih (+ b_hh[:2H]) folded in
    whh_ref  : (H, 3H)     bf16 recurrent weights (PyTorch gate order r, z, n)
    bhn_ref  : (1, H)      f32  b_hh[2H:]  (n-gate hidden bias, cannot be folded)
    last_ref : (BT, 1)     i32  clamped last-step index per row
    out_ref  : (BT, H)     f32  selected last hidden state
    """
    T = gi_ref.shape[0]
    BT, H = out_ref.shape

    def step(t, carry):
        h, out = carry
        g = gi_ref[t]                                   # (BT, 3H) f32
        # Recurrent projection on the MXU (bf16 in, f32 accumulate).
        gh = jnp.dot(h.astype(jnp.bfloat16), whh_ref[...],
                     preferred_element_type=jnp.float32)          # (BT, 3H)
        # PyTorch GRU gate order: r, z, n.  r/z biases are pre-folded into g.
        r = jax.nn.sigmoid(g[:, 0:H] + gh[:, 0:H])
        z = jax.nn.sigmoid(g[:, H:2 * H] + gh[:, H:2 * H])
        n = jnp.tanh(g[:, 2 * H:] + r * (gh[:, 2 * H:] + bhn_ref[...]))
        h_new = (1.0 - z) * n + z * h
        # _select_last: capture h_t on each row's (clamped) last valid step.
        out = jnp.where(last_ref[...] == t, h_new, out)
        return h_new, out

    zeros = jnp.zeros((BT, H), jnp.float32)
    _, selected = jax.lax.fori_loop(0, T, step, (zeros, zeros))
    out_ref[...] = selected


def _round_up(n, m):
    return ((n + m - 1) // m) * m


def gru_select_last(x, lengths, w_ih, w_hh, b_ih, b_hh, *, batch_tile=128):
    """x: (B, T, I) f32 (batch_first).  Returns (B, H) f32 = GRU(x)[:, len-1, :]."""
    B, T, I = x.shape
    H = w_hh.shape[1]
    BP = _round_up(B, batch_tile)                      # fill MXU rows / enable batch tiles

    # Time-major + batch pad (zero rows are sliced off at the end).
    x_tm = jnp.transpose(x, (1, 0, 2))                 # (T, B, I)
    x_tm = jnp.pad(x_tm, ((0, 0), (0, BP - B), (0, 0)))

    # --- Hoisted input projection: one big MXU matmul (bf16 in, f32 acc). ---
    wih_t = jnp.transpose(w_ih).astype(jnp.bfloat16)   # (I, 3H)
    gi = jnp.dot(x_tm.reshape(T * BP, I).astype(jnp.bfloat16), wih_t,
                 preferred_element_type=jnp.float32)   # (T*BP, 3H) f32
    # Fold b_ih (all gates) and b_hh for the r/z gates; only b_hh[2H:] stays in-kernel.
    b_fold = b_ih + jnp.concatenate([b_hh[:2 * H], jnp.zeros((H,), b_hh.dtype)])
    gi = (gi + b_fold).reshape(T, BP, 3 * H)

    whh_t = jnp.transpose(w_hh).astype(jnp.bfloat16)   # (H, 3H) bf16 for the MXU
    bhn = b_hh[2 * H:].reshape(1, H).astype(jnp.float32)

    # Clamped last-step index (out-of-range lengths clamp like take_along_axis).
    last = jnp.clip(lengths.astype(jnp.int32), 1, T) - 1          # (B,)
    last = jnp.pad(last, (0, BP - B)).reshape(BP, 1)

    n_bt = BP // batch_tile
    out = pl.pallas_call(
        gru_kernel,
        out_shape=jax.ShapeDtypeStruct((BP, H), jnp.float32),
        grid_spec=pltpu.PrefetchScalarGridSpec(
            num_scalar_prefetch=0,
            grid=(n_bt,),                              # batch tiles only; time loop is in-kernel
            in_specs=[
                pl.BlockSpec((T, batch_tile, 3 * H), lambda b: (0, b, 0)),   # gi
                # TODO(synk): at production H (=2400) tile W_hh^T over the 3H axis
                # (or pipeline_mode=pl.Buffered(1)) so the invariant weight is not
                # double-buffered against v7x's 64 MiB VMEM.
                pl.BlockSpec((H, 3 * H), lambda b: (0, 0)),                  # W_hh^T (bf16)
                pl.BlockSpec((1, H), lambda b: (0, 0)),                      # b_hh[2H:]
                pl.BlockSpec((batch_tile, 1), lambda b: (b, 0)),             # last-step idx
            ],
            out_specs=pl.BlockSpec((batch_tile, H), lambda b: (b, 0)),
        ),
        compiler_params=pltpu.CompilerParams(
            dimension_semantics=("parallel",),         # batch tiles are independent
        ),
    )(gi, whh_t, bhn, last)
    return out[:B]


def gru_reference(x, lengths, w_ih, w_hh, b_ih, b_hh):
    """Pure-JAX f32 reference matching torch.nn.GRU (batch_first) + _select_last."""
    B, T, I = x.shape
    H = w_hh.shape[1]

    def step(h, x_t):
        gi = x_t @ w_ih.T + b_ih
        gh = h @ w_hh.T + b_hh
        r = jax.nn.sigmoid(gi[:, :H] + gh[:, :H])
        z = jax.nn.sigmoid(gi[:, H:2 * H] + gh[:, H:2 * H])
        n = jnp.tanh(gi[:, 2 * H:] + r * gh[:, 2 * H:])
        h_new = (1.0 - z) * n + z * h
        return h_new, h_new

    h0 = jnp.zeros((B, H), jnp.float32)
    _, ys = jax.lax.scan(step, h0, jnp.transpose(x, (1, 0, 2)))
    ys = jnp.transpose(ys, (1, 0, 2))                  # (B, T, H)
    idx = (jnp.clip(lengths, 1, T) - 1).reshape(B, 1, 1)
    return jnp.take_along_axis(ys, idx, axis=1)[:, 0, :]


if __name__ == "__main__":
    # Small analogs of the module: nn.GRU(input_size=620, hidden_size=2400) run with
    # batch=100, seq_len=26 (the forward's default lengths=[26]*100); here I=64, H=128.
    B, T, I, H = 100, 26, 64, 128

    key = jax.random.PRNGKey(0)
    kx, kl, kwi, kwh, kbi, kbh = jax.random.split(key, 6)

    # Parameter init mirroring nn.GRU: U(-1/sqrt(H), 1/sqrt(H)); rows in [r; z; n] order.
    k = 1.0 / np.sqrt(H)
    w_ih = jax.random.uniform(kwi, (3 * H, I), jnp.float32, -k, k)
    w_hh = jax.random.uniform(kwh, (3 * H, H), jnp.float32, -k, k)
    b_ih = jax.random.uniform(kbi, (3 * H,), jnp.float32, -k, k)
    b_hh = jax.random.uniform(kbh, (3 * H,), jnp.float32, -k, k)

    x = jax.random.normal(kx, (B, T, I), jnp.float32)
    lengths = jax.random.randint(kl, (B,), 1, T + 1).astype(jnp.int32)

    gru_fn = jax.jit(gru_select_last)
    out = jax.block_until_ready(gru_fn(x, lengths, w_ih, w_hh, b_ih, b_hh))
    ref = jax.block_until_ready(gru_reference(x, lengths, w_ih, w_hh, b_ih, b_hh))

    # bf16 MXU inputs (f32 accumulate) vs pure-f32 reference -> relaxed tolerance.
    np.testing.assert_allclose(np.asarray(out), np.asarray(ref), rtol=2e-2, atol=2e-2)

    print("KERNEL_OK")
</pallas_src>

<mosaic_0001>
module attributes {stable_mosaic.version = 11 : i64} {
  func.func @gru_kernel(%arg0: i32, %arg1: memref<26x128x384xf32, #tpu.memory_space<vmem>>, %arg2: memref<128x384xbf16, #tpu.memory_space<vmem>>, %arg3: memref<1x128xf32, #tpu.memory_space<vmem>>, %arg4: memref<128x1xi32, #tpu.memory_space<vmem>>, %arg5: memref<128x128xf32, #tpu.memory_space<vmem>>) attributes {dimension_semantics = [#tpu.dimension_semantics<parallel>], iteration_bounds = array<i64: 1>, scalar_prefetch = 0 : i64, scratch_operands = 0 : i64, tpu.core_type = #tpu.core_type<tc>, window_params = [{transform_indices = @transform_0, window_bounds = array<i64: 26, 128, 384>}, {pipeline_mode = #tpu.pipeline_mode<synchronous>, transform_indices = @transform_1, window_bounds = array<i64: 128, 384>}, {pipeline_mode = #tpu.pipeline_mode<synchronous>, transform_indices = @transform_2, window_bounds = array<i64: 1, 128>}, {transform_indices = @transform_3, window_bounds = array<i64: 128, 1>}, {transform_indices = @transform_4, window_bounds = array<i64: 128, 128>}]} {
    %cst = arith.constant 0.000000e+00 : f32
    %0 = vector.broadcast %cst : f32 to vector<128x128xf32>
    %c0_i32 = arith.constant 0 : i32
    %c26_i32 = arith.constant 26 : i32
    %1 = arith.addi %c0_i32, %c26_i32 : i32
    %c1_i32 = arith.constant 1 : i32
    %2:2 = scf.for %arg6 = %c0_i32 to %1 step %c1_i32 iter_args(%arg7 = %0, %arg8 = %0) -> (vector<128x128xf32>, vector<128x128xf32>)  : i32 {
      %4 = arith.index_cast %arg6 : i32 to index
      %c0_2 = arith.constant 0 : index
      %c0_3 = arith.constant 0 : index
      %5 = vector.load %arg1[%4, %c0_2, %c0_3] : memref<26x128x384xf32, #tpu.memory_space<vmem>>, vector<1x128x384xf32>
      %6 = vector.shape_cast %5 : vector<1x128x384xf32> to vector<128x384xf32>
      %7 = arith.truncf %arg7 : vector<128x128xf32> to vector<128x128xbf16>
      %c0_4 = arith.constant 0 : index
      %c0_5 = arith.constant 0 : index
      %8 = vector.load %arg2[%c0_4, %c0_5] : memref<128x384xbf16, #tpu.memory_space<vmem>>, vector<128x384xbf16>
      %cst_6 = arith.constant dense<0.000000e+00> : vector<128x384xf32>
      %9 = tpu.matmul %7, %8, %cst_6 {dimension_numbers = #tpu.dot_dimension_numbers<[1], [0], [0], [1], [0, 0, 1, 1], [], []>} : vector<128x128xbf16>, vector<128x384xbf16>, vector<128x384xf32> -> vector<128x384xf32>
      %10 = vector.extract_strided_slice %6 {offsets = [0, 0], sizes = [128, 128], strides = [1, 1]} : vector<128x384xf32> to vector<128x128xf32>
      %11 = vector.extract_strided_slice %9 {offsets = [0, 0], sizes = [128, 128], strides = [1, 1]} : vector<128x384xf32> to vector<128x128xf32>
      %12 = arith.addf %10, %11 : vector<128x128xf32>
      %13 = arith.negf %12 : vector<128x128xf32>
      %14 = math.exp %13 : vector<128x128xf32>
      %cst_7 = arith.constant 1.000000e+00 : f32
      %15 = vector.broadcast %cst_7 : f32 to vector<128x128xf32>
      %16 = arith.addf %15, %14 : vector<128x128xf32>
      %17 = arith.divf %15, %16 : vector<128x128xf32>
      %18 = vector.extract_strided_slice %6 {offsets = [0, 128], sizes = [128, 128], strides = [1, 1]} : vector<128x384xf32> to vector<128x128xf32>
      %19 = vector.extract_strided_slice %9 {offsets = [0, 128], sizes = [128, 128], strides = [1, 1]} : vector<128x384xf32> to vector<128x128xf32>
      %20 = arith.addf %18, %19 : vector<128x128xf32>
      %21 = arith.negf %20 : vector<128x128xf32>
      %22 = math.exp %21 : vector<128x128xf32>
      %cst_8 = arith.constant 1.000000e+00 : f32
      %23 = vector.broadcast %cst_8 : f32 to vector<128x128xf32>
      %24 = arith.addf %23, %22 : vector<128x128xf32>
      %25 = arith.divf %23, %24 : vector<128x128xf32>
      %26 = vector.extract_strided_slice %6 {offsets = [0, 256], sizes = [128, 128], strides = [1, 1]} : vector<128x384xf32> to vector<128x128xf32>
      %27 = vector.extract_strided_slice %9 {offsets = [0, 256], sizes = [128, 128], strides = [1, 1]} : vector<128x384xf32> to vector<128x128xf32>
      %c0_9 = arith.constant 0 : index
      %c0_10 = arith.constant 0 : index
      %28 = vector.load %arg3[%c0_9, %c0_10] : memref<1x128xf32, #tpu.memory_space<vmem>>, vector<1x128xf32>
      %29 = vector.broadcast %28 : vector<1x128xf32> to vector<128x128xf32>
      %30 = arith.addf %27, %29 : vector<128x128xf32>
      %31 = arith.mulf %17, %30 : vector<128x128xf32>
      %32 = arith.addf %26, %31 : vector<128x128xf32>
      %33 = math.tanh %32 : vector<128x128xf32>
      %cst_11 = arith.constant 1.000000e+00 : f32
      %34 = vector.broadcast %cst_11 : f32 to vector<128x128xf32>
      %35 = arith.subf %34, %25 : vector<128x128xf32>
      %36 = arith.mulf %35, %33 : vector<128x128xf32>
      %37 = arith.mulf %25, %arg7 : vector<128x128xf32>
      %38 = arith.addf %36, %37 : vector<128x128xf32>
      %c0_12 = arith.constant 0 : index
      %c0_13 = arith.constant 0 : index
      %39 = vector.load %arg4[%c0_12, %c0_13] : memref<128x1xi32, #tpu.memory_space<vmem>>, vector<128x1xi32>
      %40 = vector.broadcast %arg6 : i32 to vector<128x1xi32>
      %41 = arith.cmpi eq, %39, %40 : vector<128x1xi32>
      %42 = vector.shape_cast %41 : vector<128x1xi1> to vector<128x1xi1>
      %43 = vector.broadcast %42 : vector<128x1xi1> to vector<128x128xi1>
      %44 = arith.select %43, %38, %arg8 : vector<128x128xi1>, vector<128x128xf32>
      scf.yield %38, %44 : vector<128x128xf32>, vector<128x128xf32>
    }
    %c26_i32_0 = arith.constant 26 : i32
    %c0 = arith.constant 0 : index
    %c0_1 = arith.constant 0 : index
    %3 = vector.load %arg5[%c0, %c0_1] : memref<128x128xf32, #tpu.memory_space<vmem>>, vector<128x128xf32>
    tpu.vector_store %arg5[%c0, %c0_1], %2#1 {strides = array<i32>} : memref<128x128xf32, #tpu.memory_space<vmem>>, vector<128x128xf32>,
    return
  }
  func.func @transform_0(%arg0: i32) -> (i32, i32, i32) {
    %c0_i32 = arith.constant 0 : i32
    %c0_i32_0 = arith.constant 0 : i32
    %c0_i32_1 = arith.constant 0 : i32
    return %c0_i32, %arg0, %c0_i32_0 : i32, i32, i32
  }
  func.func @transform_1(%arg0: i32) -> (i32, i32) {
    %c0_i32 = arith.constant 0 : i32
    %c0_i32_0 = arith.constant 0 : i32
    %c0_i32_1 = arith.constant 0 : i32
    return %c0_i32, %c0_i32_0 : i32, i32
  }
  func.func @transform_2(%arg0: i32) -> (i32, i32) {
    %c0_i32 = arith.constant 0 : i32
    %c0_i32_0 = arith.constant 0 : i32
    %c0_i32_1 = arith.constant 0 : i32
    return %c0_i32, %c0_i32_0 : i32, i32
  }
  func.func @transform_3(%arg0: i32) -> (i32, i32) {
    %c0_i32 = arith.constant 0 : i32
    %c0_i32_0 = arith.constant 0 : i32
    return %arg0, %c0_i32 : i32, i32
  }
  func.func @transform_4(%arg0: i32) -> (i32, i32) {
    %c0_i32 = arith.constant 0 : i32
    %c0_i32_0 = arith.constant 0 : i32
    return %arg0, %c0_i32 : i32, i32
  }
}

</mosaic_0001>

<llo_original>
// kernel: gru_select_last.1
$region0: #{gru_select_last.1}
  #allocation0 [shape = 'u32[]', space=smem, size = 0x4, offset = 0x4, fixed_abs, tag = 'smem constant byte address 0x4 - core index']
  #allocation1 [shape = 'u32[72,128]{1,0:T(1,128)}', space=vmem, size = 0x9000, scoped, tag = 'internal scratch']
  %s0 = inlined_call_operand.vmem [shape: f32[26,128,384], index: 0, kind: input, shape index: {}]
  %s1 = inlined_call_operand.vmem [shape: bf16[128,384], index: 1, kind: input, shape index: {}]
  %s2 = inlined_call_operand.vmem [shape: f32[1,128], index: 2, kind: input, shape index: {}]
  %s3 = inlined_call_operand.vmem [shape: s32[128,1], index: 3, kind: input, shape index: {}]
  %s4 = inlined_call_operand.vmem [shape: f32[128,128], index: 4, kind: output, shape index: {}]
  %s5 = sld [smem:[#allocation0]]
  $region33: #{gru_select_last.1} parent=0
    _
  %s7 = ssub.s32 1, %s5
  %s8 = scalar_select 0, %s7, %s5
  // Predicated region
  $region2: #{gru_select_last.1} parent=0 // pred_check
    _
  $region3: #{gru_select_last.1} parent=0 // pred_check_branch
    %10 = sbr.rel (0) target = $region5
  $region4: #{gru_select_last.1} parent=0 // pred_region
    _
  $region5: #{gru_select_last.1} parent=0 // pred_fallthru
    _
  // Predicated region
  $region6: #{gru_select_last.1} parent=0 // pred_check
    _
  $region7: #{gru_select_last.1} parent=0 // pred_check_branch
    %12 = sbr.rel (0) target = $region9
  $region8: #{gru_select_last.1} parent=0 // pred_region
    _
  $region9: #{gru_select_last.1} parent=0 // pred_fallthru
    _
  // Predicated region
  $region10: #{gru_select_last.1} parent=0 // pred_check
    _
  $region11: #{gru_select_last.1} parent=0 // pred_check_branch
    %14 = sbr.rel (0) target = $region13
  $region12: #{gru_select_last.1} parent=0 // pred_region
    _
  $region13: #{gru_select_last.1} parent=0 // pred_fallthru
    _
  // Predicated region
  $region14: #{gru_select_last.1} parent=0 // pred_check
    _
  $region15: #{gru_select_last.1} parent=0 // pred_check_branch
    %16 = sbr.rel (0) target = $region17
  $region16: #{gru_select_last.1} parent=0 // pred_region
    _
  $region17: #{gru_select_last.1} parent=0 // pred_fallthru
    _
  loop: start=0, step=1, limit=26
  $region18: #{gru_select_last.1} parent=0 // loop_pre_header
    _
  $region19: #{gru_select_last.1} parent=0 // loop_header
    %s18 = sphi 0, %s22
    %p19 = scmp.ge.s32.totalorder %s18, 26
    %v23 = vphi 0.0, %v1177
    %v24 = vphi 0.0, %v1178
    %v25 = vphi 0.0, %v1179
    %v26 = vphi 0.0, %v1180
    %v27 = vphi 0.0, %v1181
    %v28 = vphi 0.0, %v1182
    %v29 = vphi 0.0, %v1183
    %v30 = vphi 0.0, %v1184
    %v31 = vphi 0.0, %v1185
    %v32 = vphi 0.0, %v1186
    %v33 = vphi 0.0, %v1187
    %v34 = vphi 0.0, %v1188
    %v35 = vphi 0.0, %v1189
    %v36 = vphi 0.0, %v1190
    %v37 = vphi 0.0, %v1191
    %v38 = vphi 0.0, %v1192
    %v39 = vphi 0.0, %v1306
    %v40 = vphi 0.0, %v1307
    %v41 = vphi 0.0, %v1308
    %v42 = vphi 0.0, %v1309
    %v43 = vphi 0.0, %v1310
    %v44 = vphi 0.0, %v1311
    %v45 = vphi 0.0, %v1312
    %v46 = vphi 0.0, %v1313
    %v47 = vphi 0.0, %v1314
    %v48 = vphi 0.0, %v1315
    %v49 = vphi 0.0, %v1316
    %v50 = vphi 0.0, %v1317
    %v51 = vphi 0.0, %v1318
    %v52 = vphi 0.0, %v1319
    %v53 = vphi 0.0, %v1320
    %v54 = vphi 0.0, %v1321
  $region20: #{gru_select_last.1} parent=0 // loop_header_branch
    %21 = sbr.rel (%p19) target = $region24
  $region21: #{gru_select_last.1} parent=0 // loop_body
    %s55 = smul.u32 %s18, 48
    %s56 = smul.addr %s55, 8
    %s57 = scalar_lea.vmem %s0, %s56
    %v58 = vld [vmem:[%s57] sm:$0xff]
    %v59 = vld [vmem:[%s57 + $0x8] sm:$0xff]
    %v60 = vld [vmem:[%s57 + $0x10] sm:$0xff]
    %v61 = vld [vmem:[%s57 + $0x18] sm:$0xff]
    %v62 = vld [vmem:[%s57 + $0x20] sm:$0xff]
    %v63 = vld [vmem:[%s57 + $0x28] sm:$0xff]
    %v64 = vld [vmem:[%s57 + $0x30] sm:$0xff]
    %v65 = vld [vmem:[%s57 + $0x38] sm:$0xff]
    %v66 = vld [vmem:[%s57 + $0x40] sm:$0xff]
    %v67 = vld [vmem:[%s57 + $0x48] sm:$0xff]
    %v68 = vld [vmem:[%s57 + $0x50] sm:$0xff]
    %v69 = vld [vmem:[%s57 + $0x58] sm:$0xff]
    %v70 = vld [vmem:[%s57 + $0x60] sm:$0xff]
    %v71 = vld [vmem:[%s57 + $0x68] sm:$0xff]
    %v72 = vld [vmem:[%s57 + $0x70] sm:$0xff]
    %v73 = vld [vmem:[%s57 + $0x78] sm:$0xff]
    %v74 = vld [vmem:[%s57 + $0x80] sm:$0xff]
    %v75 = vld [vmem:[%s57 + $0x88] sm:$0xff]
    %v76 = vld [vmem:[%s57 + $0x90] sm:$0xff]
    %v77 = vld [vmem:[%s57 + $0x98] sm:$0xff]
    %v78 = vld [vmem:[%s57 + $0xa0] sm:$0xff]
    %v79 = vld [vmem:[%s57 + $0xa8] sm:$0xff]
    %v80 = vld [vmem:[%s57 + $0xb0] sm:$0xff]
    %v81 = vld [vmem:[%s57 + $0xb8] sm:$0xff]
    %v82 = vld [vmem:[%s57 + $0xc0] sm:$0xff]
    %v83 = vld [vmem:[%s57 + $0xc8] sm:$0xff]
    %v84 = vld [vmem:[%s57 + $0xd0] sm:$0xff]
    %v85 = vld [vmem:[%s57 + $0xd8] sm:$0xff]
    %v86 = vld [vmem:[%s57 + $0xe0] sm:$0xff]
    %v87 = vld [vmem:[%s57 + $0xe8] sm:$0xff]
    %v88 = vld [vmem:[%s57 + $0xf0] sm:$0xff]
    %v89 = vld [vmem:[%s57 + $0xf8] sm:$0xff]
    %v90 = vld [vmem:[%s57 + $0x100] sm:$0xff]
    %v91 = vld [vmem:[%s57 + $0x108] sm:$0xff]
    %v92 = vld [vmem:[%s57 + $0x110] sm:$0xff]
    %v93 = vld [vmem:[%s57 + $0x118] sm:$0xff]
    %v94 = vld [vmem:[%s57 + $0x120] sm:$0xff]
    %v95 = vld [vmem:[%s57 + $0x128] sm:$0xff]
    %v96 = vld [vmem:[%s57 + $0x130] sm:$0xff]
    %v97 = vld [vmem:[%s57 + $0x138] sm:$0xff]
    %v98 = vld [vmem:[%s57 + $0x140] sm:$0xff]
    %v99 = vld [vmem:[%s57 + $0x148] sm:$0xff]
    %v100 = vld [vmem:[%s57 + $0x150] sm:$0xff]
    %v101 = vld [vmem:[%s57 + $0x158] sm:$0xff]
    %v102 = vld [vmem:[%s57 + $0x160] sm:$0xff]
    %v103 = vld [vmem:[%s57 + $0x168] sm:$0xff]
    %v104 = vld [vmem:[%s57 + $0x170] sm:$0xff]
    %v105 = vld [vmem:[%s57 + $0x178] sm:$0xff]
    %v106 = vpack.c.bf16 %v24, %v23
    %v107 = vpack.c.bf16 %v26, %v25
    %v108 = vpack.c.bf16 %v28, %v27
    %v109 = vpack.c.bf16 %v30, %v29
    %v110 = vpack.c.bf16 %v32, %v31
    %v111 = vpack.c.bf16 %v34, %v33
    %v112 = vpack.c.bf16 %v36, %v35
    %v113 = vpack.c.bf16 %v38, %v37
    %v114 = vld [vmem:[%s1] sm:$0xff]
    %v115 = vld [vmem:[%s1 + $0x8] sm:$0xf]
    %v116 = vld [vmem:[%s1 + $0xc] sm:$0xff]
    %v117 = vld [vmem:[%s1 + $0x14] sm:$0xf]
    %v118 = vld [vmem:[%s1 + $0x18] sm:$0xff]
    %v119 = vld [vmem:[%s1 + $0x20] sm:$0xf]
    %v120 = vld [vmem:[%s1 + $0x24] sm:$0xff]
    %v121 = vld [vmem:[%s1 + $0x2c] sm:$0xf]
    %v122 = vld [vmem:[%s1 + $0x30] sm:$0xff]
    %v123 = vld [vmem:[%s1 + $0x38] sm:$0xf]
    %v124 = vld [vmem:[%s1 + $0x3c] sm:$0xff]
    %v125 = vld [vmem:[%s1 + $0x44] sm:$0xf]
    %v126 = vld [vmem:[%s1 + $0x48] sm:$0xff]
    %v127 = vld [vmem:[%s1 + $0x50] sm:$0xf]
    %v128 = vld [vmem:[%s1 + $0x54] sm:$0xff]
    %v129 = vld [vmem:[%s1 + $0x5c] sm:$0xf]
    %v130 = vld [vmem:[%s1 + $0x60] sm:$0xff]
    %v131 = vld [vmem:[%s1 + $0x68] sm:$0xf]
    %v132 = vld [vmem:[%s1 + $0x6c] sm:$0xff]
    %v133 = vld [vmem:[%s1 + $0x74] sm:$0xf]
    %v134 = vld [vmem:[%s1 + $0x78] sm:$0xff]
    %v135 = vld [vmem:[%s1 + $0x80] sm:$0xf]
    %v136 = vld [vmem:[%s1 + $0x84] sm:$0xff]
    %v137 = vld [vmem:[%s1 + $0x8c] sm:$0xf]
    %v138 = vld [vmem:[%s1 + $0x90] sm:$0xff]
    %v139 = vld [vmem:[%s1 + $0x98] sm:$0xf]
    %v140 = vld [vmem:[%s1 + $0x9c] sm:$0xff]
    %v141 = vld [vmem:[%s1 + $0xa4] sm:$0xf]
    %v142 = vld [vmem:[%s1 + $0xa8] sm:$0xff]
    %v143 = vld [vmem:[%s1 + $0xb0] sm:$0xf]
    %v144 = vld [vmem:[%s1 + $0xb4] sm:$0xff]
    %v145 = vld [vmem:[%s1 + $0xbc] sm:$0xf]
    %v178 = vunpack.c.l.b16 %v114
    %v179 = vunpack.c.h.b16 %v114
    %v180 = vunpack.c.l.b16 %v115
    %v181 = vunpack.c.l.b16 %v116
    %v182 = vunpack.c.h.b16 %v116
    %v183 = vunpack.c.l.b16 %v117
    %v184 = vunpack.c.l.b16 %v118
    %v185 = vunpack.c.h.b16 %v118
    %v186 = vunpack.c.l.b16 %v119
    %v187 = vunpack.c.l.b16 %v120
    %v188 = vunpack.c.h.b16 %v120
    %v189 = vunpack.c.l.b16 %v121
    %v190 = vunpack.c.l.b16 %v122
    %v191 = vunpack.c.h.b16 %v122
    %v192 = vunpack.c.l.b16 %v123
    %v193 = vunpack.c.l.b16 %v124
    %v194 = vunpack.c.h.b16 %v124
    %v195 = vunpack.c.l.b16 %v125
    %v196 = vunpack.c.l.b16 %v126
    %v197 = vunpack.c.h.b16 %v126
    %v198 = vunpack.c.l.b16 %v127
    %v199 = vunpack.c.l.b16 %v128
    %v200 = vunpack.c.h.b16 %v128
    %v201 = vunpack.c.l.b16 %v129
    %v202 = vunpack.c.l.b16 %v130
    %v203 = vunpack.c.h.b16 %v130
    %v204 = vunpack.c.l.b16 %v131
    %v205 = vunpack.c.l.b16 %v132
    %v206 = vunpack.c.h.b16 %v132
    %v207 = vunpack.c.l.b16 %v133
    %v208 = vunpack.c.l.b16 %v134
    %v209 = vunpack.c.h.b16 %v134
    %v210 = vunpack.c.l.b16 %v135
    %v211 = vunpack.c.l.b16 %v136
    %v212 = vunpack.c.h.b16 %v136
    %v213 = vunpack.c.l.b16 %v137
    %v214 = vunpack.c.l.b16 %v138
    %v215 = vunpack.c.h.b16 %v138
    %v216 = vunpack.c.l.b16 %v139
    %v217 = vunpack.c.l.b16 %v140
    %v218 = vunpack.c.h.b16 %v140
    %v219 = vunpack.c.l.b16 %v141
    %v220 = vunpack.c.l.b16 %v142
    %v221 = vunpack.c.h.b16 %v142
    %v222 = vunpack.c.l.b16 %v143
    %v223 = vunpack.c.l.b16 %v144
    %v224 = vunpack.c.h.b16 %v144
    %v225 = vunpack.c.l.b16 %v145
    %v226 = vpack.c.b16 %v181, %v178
    %v227 = vpack.c.b16 %v182, %v179
    %v228 = vpack.c.b16 %v183, %v180
    %v229 = vpack.c.b16 %v187, %v184
    %v230 = vpack.c.b16 %v188, %v185
    %v231 = vpack.c.b16 %v189, %v186
    %v232 = vpack.c.b16 %v193, %v190
    %v233 = vpack.c.b16 %v194, %v191
    %v234 = vpack.c.b16 %v195, %v192
    %v235 = vpack.c.b16 %v199, %v196
    %v236 = vpack.c.b16 %v200, %v197
    %v237 = vpack.c.b16 %v201, %v198
    %v238 = vpack.c.b16 %v205, %v202
    %v239 = vpack.c.b16 %v206, %v203
    %v240 = vpack.c.b16 %v207, %v204
    %v241 = vpack.c.b16 %v211, %v208
    %v242 = vpack.c.b16 %v212, %v209
    %v243 = vpack.c.b16 %v213, %v210
    %v244 = vpack.c.b16 %v217, %v214
    %v245 = vpack.c.b16 %v218, %v215
    %v246 = vpack.c.b16 %v219, %v216
    %v247 = vpack.c.b16 %v223, %v220
    %v248 = vpack.c.b16 %v224, %v221
    %v249 = vpack.c.b16 %v225, %v222
    %274 = vmatpush.bf16.msra.mxu0 %v247
    %275 = vmatpush.bf16.msra.mxu0 %v244
    %276 = vmatpush.bf16.msra.mxu0 %v241
    %277 = vmatpush.bf16.msra.mxu0 %v238
    %278 = vmatpush.bf16.msra.mxu0 %v235
    %279 = vmatpush.bf16.msra.mxu0 %v232
    %280 = vmatpush.bf16.msra.mxu0 %v229
    %281 = vmatpush.bf16.msra.mxu0 %v226
    %282 = vmatmul.bf16.gmra.mxu0 %v106
    %v283 = vpop.f32.mrf.mxu0
    %v284 = vadd.f32 0.0, %v283
    %v285 = vpop.f32.mrf.mxu0
    %v286 = vadd.f32 0.0, %v285
    %287 = vmatmul.bf16.gmra.mxu0 %v107
    %v288 = vpop.f32.mrf.mxu0
    %v289 = vadd.f32 0.0, %v288
    %v290 = vpop.f32.mrf.mxu0
    %v291 = vadd.f32 0.0, %v290
    %292 = vmatmul.bf16.gmra.mxu0 %v108
    %v293 = vpop.f32.mrf.mxu0
    %v294 = vadd.f32 0.0, %v293
    %v295 = vpop.f32.mrf.mxu0
    %v296 = vadd.f32 0.0, %v295
    %297 = vmatmul.bf16.gmra.mxu0 %v109
    %v298 = vpop.f32.mrf.mxu0
    %v299 = vadd.f32 0.0, %v298
    %v300 = vpop.f32.mrf.mxu0
    %v301 = vadd.f32 0.0, %v300
    %302 = vmatmul.bf16.gmra.mxu0 %v110
    %v303 = vpop.f32.mrf.mxu0
    %v304 = vadd.f32 0.0, %v303
    %v305 = vpop.f32.mrf.mxu0
    %v306 = vadd.f32 0.0, %v305
    %307 = vmatmul.bf16.gmra.mxu0 %v111
    %v308 = vpop.f32.mrf.mxu0
    %v309 = vadd.f32 0.0, %v308
    %v310 = vpop.f32.mrf.mxu0
    %v311 = vadd.f32 0.0, %v310
    %312 = vmatmul.bf16.gmra.mxu0 %v112
    %v313 = vpop.f32.mrf.mxu0
    %v314 = vadd.f32 0.0, %v313
    %v315 = vpop.f32.mrf.mxu0
    %v316 = vadd.f32 0.0, %v315
    %317 = vmatmul.bf16.gmra.mxu0 %v113
    %v318 = vpop.f32.mrf.mxu0
    %v319 = vadd.f32 0.0, %v318
    %v320 = vpop.f32.mrf.mxu0
    %v321 = vadd.f32 0.0, %v320
    %322 = vdwg.mxu0
    %323 = vmatpush.bf16.msra.mxu0 %v248
    %324 = vmatpush.bf16.msra.mxu0 %v245
    %325 = vmatpush.bf16.msra.mxu0 %v242
    %326 = vmatpush.bf16.msra.mxu0 %v239
    %327 = vmatpush.bf16.msra.mxu0 %v236
    %328 = vmatpush.bf16.msra.mxu0 %v233
    %329 = vmatpush.bf16.msra.mxu0 %v230
    %330 = vmatpush.bf16.msra.mxu0 %v227
    %331 = vmatmul.bf16.gmra.mxu0 %v106
    %v332 = vpop.f32.mrf.mxu0
    %v333 = vadd.f32 0.0, %v332
    %v334 = vpop.f32.mrf.mxu0
    %v335 = vadd.f32 0.0, %v334
    %336 = vmatmul.bf16.gmra.mxu0 %v107
    %v337 = vpop.f32.mrf.mxu0
    %v338 = vadd.f32 0.0, %v337
    %v339 = vpop.f32.mrf.mxu0
    %v340 = vadd.f32 0.0, %v339
    %341 = vmatmul.bf16.gmra.mxu0 %v108
    %v342 = vpop.f32.mrf.mxu0
    %v343 = vadd.f32 0.0, %v342
    %v344 = vpop.f32.mrf.mxu0
    %v345 = vadd.f32 0.0, %v344
    %346 = vmatmul.bf16.gmra.mxu0 %v109
    %v347 = vpop.f32.mrf.mxu0
    %v348 = vadd.f32 0.0, %v347
    %v349 = vpop.f32.mrf.mxu0
    %v350 = vadd.f32 0.0, %v349
    %351 = vmatmul.bf16.gmra.mxu0 %v110
    %v352 = vpop.f32.mrf.mxu0
    %v353 = vadd.f32 0.0, %v352
    %v354 = vpop.f32.mrf.mxu0
    %v355 = vadd.f32 0.0, %v354
    %356 = vmatmul.bf16.gmra.mxu0 %v111
    %v357 = vpop.f32.mrf.mxu0
    %v358 = vadd.f32 0.0, %v357
    %v359 = vpop.f32.mrf.mxu0
    %v360 = vadd.f32 0.0, %v359
    %361 = vmatmul.bf16.gmra.mxu0 %v112
    %v362 = vpop.f32.mrf.mxu0
    %v363 = vadd.f32 0.0, %v362
    %v364 = vpop.f32.mrf.mxu0
    %v365 = vadd.f32 0.0, %v364
    %366 = vmatmul.bf16.gmra.mxu0 %v113
    %v367 = vpop.f32.mrf.mxu0
    %v368 = vadd.f32 0.0, %v367
    %v369 = vpop.f32.mrf.mxu0
    %v370 = vadd.f32 0.0, %v369
    %371 = vdwg.mxu0
    %372 = vmatpush.bf16.msra.mxu0 %v249
    %373 = vmatpush.bf16.msra.mxu0 %v246
    %374 = vmatpush.bf16.msra.mxu0 %v243
    %375 = vmatpush.bf16.msra.mxu0 %v240
    %376 = vmatpush.bf16.msra.mxu0 %v237
    %377 = vmatpush.bf16.msra.mxu0 %v234
    %378 = vmatpush.bf16.msra.mxu0 %v231
    %379 = vmatpush.bf16.msra.mxu0 %v228
    %380 = vmatmul.bf16.gmra.mxu0 %v106
    %v381 = vpop.f32.mrf.mxu0
    %v382 = vadd.f32 0.0, %v381
    %v383 = vpop.f32.mrf.mxu0
    %v384 = vadd.f32 0.0, %v383
    %385 = vmatmul.bf16.gmra.mxu0 %v107
    %v386 = vpop.f32.mrf.mxu0
    %v387 = vadd.f32 0.0, %v386
    %v388 = vpop.f32.mrf.mxu0
    %v389 = vadd.f32 0.0, %v388
    %390 = vmatmul.bf16.gmra.mxu0 %v108
    %v391 = vpop.f32.mrf.mxu0
    %v392 = vadd.f32 0.0, %v391
    %v393 = vpop.f32.mrf.mxu0
    %v394 = vadd.f32 0.0, %v393
    %395 = vmatmul.bf16.gmra.mxu0 %v109
    %v396 = vpop.f32.mrf.mxu0
    %v397 = vadd.f32 0.0, %v396
    %v398 = vpop.f32.mrf.mxu0
    %v399 = vadd.f32 0.0, %v398
    %400 = vmatmul.bf16.gmra.mxu0 %v110
    %v401 = vpop.f32.mrf.mxu0
    %v402 = vadd.f32 0.0, %v401
    %v403 = vpop.f32.mrf.mxu0
    %v404 = vadd.f32 0.0, %v403
    %405 = vmatmul.bf16.gmra.mxu0 %v111
    %v406 = vpop.f32.mrf.mxu0
    %v407 = vadd.f32 0.0, %v406
    %v408 = vpop.f32.mrf.mxu0
    %v409 = vadd.f32 0.0, %v408
    %410 = vmatmul.bf16.gmra.mxu0 %v112
    %v411 = vpop.f32.mrf.mxu0
    %v412 = vadd.f32 0.0, %v411
    %v413 = vpop.f32.mrf.mxu0
    %v414 = vadd.f32 0.0, %v413
    %415 = vmatmul.bf16.gmra.mxu0 %v113
    %v416 = vpop.f32.mrf.mxu0
    %v417 = vadd.f32 0.0, %v416
    %v418 = vpop.f32.mrf.mxu0
    %v419 = vadd.f32 0.0, %v418
    %420 = vdwg.mxu0
    %v421 = vadd.f32 %v58, %v284
    %v422 = vadd.f32 %v61, %v286
    %v423 = vadd.f32 %v64, %v289
    %v424 = vadd.f32 %v67, %v291
    %v425 = vadd.f32 %v70, %v294
    %v426 = vadd.f32 %v73, %v296
    %v427 = vadd.f32 %v76, %v299
    %v428 = vadd.f32 %v79, %v301
    %v429 = vadd.f32 %v82, %v304
    %v430 = vadd.f32 %v85, %v306
    %v431 = vadd.f32 %v88, %v309
    %v432 = vadd.f32 %v91, %v311
    %v433 = vadd.f32 %v94, %v314
    %v434 = vadd.f32 %v97, %v316
    %v435 = vadd.f32 %v100, %v319
    %v436 = vadd.f32 %v103, %v321
    %v437 = vxor.u32 %v421, 2147483648
    %v438 = vxor.u32 %v422, 2147483648
    %v439 = vxor.u32 %v423, 2147483648
    %v440 = vxor.u32 %v424, 2147483648
    %v441 = vxor.u32 %v425, 2147483648
    %v442 = vxor.u32 %v426, 2147483648
    %v443 = vxor.u32 %v427, 2147483648
    %v444 = vxor.u32 %v428, 2147483648
    %v445 = vxor.u32 %v429, 2147483648
    %v446 = vxor.u32 %v430, 2147483648
    %v447 = vxor.u32 %v431, 2147483648
    %v448 = vxor.u32 %v432, 2147483648
    %v449 = vxor.u32 %v433, 2147483648
    %v450 = vxor.u32 %v434, 2147483648
    %v451 = vxor.u32 %v435, 2147483648
    %v452 = vxor.u32 %v436, 2147483648
    %v453 = vmul.f32 %v437, 1.442695
    %v454 = vpow.pop %v453
    %v455 = vmul.f32 %v438, 1.442695
    %v456 = vpow.pop %v455
    %v457 = vmul.f32 %v439, 1.442695
    %v458 = vpow.pop %v457
    %v459 = vmul.f32 %v440, 1.442695
    %v460 = vpow.pop %v459
    %v461 = vmul.f32 %v441, 1.442695
    %v462 = vpow.pop %v461
    %v463 = vmul.f32 %v442, 1.442695
    %v464 = vpow.pop %v463
    %v465 = vmul.f32 %v443, 1.442695
    %v466 = vpow.pop %v465
    %v467 = vmul.f32 %v444, 1.442695
    %v468 = vpow.pop %v467
    %v469 = vmul.f32 %v445, 1.442695
    %v470 = vpow.pop %v469
    %v471 = vmul.f32 %v446, 1.442695
    %v472 = vpow.pop %v471
    %v473 = vmul.f32 %v447, 1.442695
    %v474 = vpow.pop %v473
    %v475 = vmul.f32 %v448, 1.442695
    %v476 = vpow.pop %v475
    %v477 = vmul.f32 %v449, 1.442695
    %v478 = vpow.pop %v477
    %v479 = vmul.f32 %v450, 1.442695
    %v480 = vpow.pop %v479
    %v481 = vmul.f32 %v451, 1.442695
    %v482 = vpow.pop %v481
    %v483 = vmul.f32 %v452, 1.442695
    %v484 = vpow.pop %v483
    %v485 = vadd.f32 %v454, 1.0
    %v486 = vadd.f32 %v456, 1.0
    %v487 = vadd.f32 %v458, 1.0
    %v488 = vadd.f32 %v460, 1.0
    %v489 = vadd.f32 %v462, 1.0
    %v490 = vadd.f32 %v464, 1.0
    %v491 = vadd.f32 %v466, 1.0
    %v492 = vadd.f32 %v468, 1.0
    %v493 = vadd.f32 %v470, 1.0
    %v494 = vadd.f32 %v472, 1.0
    %v495 = vadd.f32 %v474, 1.0
    %v496 = vadd.f32 %v476, 1.0
    %v497 = vadd.f32 %v478, 1.0
    %v498 = vadd.f32 %v480, 1.0
    %v499 = vadd.f32 %v482, 1.0
    %v500 = vadd.f32 %v484, 1.0
    %v501 = vrcp.pop %v485
    %v502 = vmul.f32 %v485, %v501
    %v503 = vsub.f32 1.0, %v502
    %v504 = vmul.f32 %v501, %v503
    %v505 = vadd.f32 %v501, %v504
    %vm506 = vweird.f32 %v485
    %vm507 = vweird.f32 %v501
    %vm508 = vmor %vm506, %vm507
    %v509 = vsel %vm508, %v501, %v505
    %v510 = vand.u32 2147483647, %v485
    %vm511 = vcmp.eq.f32.partialorder %v510, 8.507059e+37
    %v512 = vand.u32 %v485, 2147483648
    %v513 = vor.u32 1.1754944e-38, %v512
    %v514 = vsel %vm511, %v513, %v509
    %v515 = vmul.f32 1.0, %v514
    %v516 = vrcp.pop %v486
    %v517 = vmul.f32 %v486, %v516
    %v518 = vsub.f32 1.0, %v517
    %v519 = vmul.f32 %v516, %v518
    %v520 = vadd.f32 %v516, %v519
    %vm521 = vweird.f32 %v486
    %vm522 = vweird.f32 %v516
    %vm523 = vmor %vm521, %vm522
    %v524 = vsel %vm523, %v516, %v520
    %v525 = vand.u32 2147483647, %v486
    %vm526 = vcmp.eq.f32.partialorder %v525, 8.507059e+37
    %v527 = vand.u32 %v486, 2147483648
    %v528 = vor.u32 1.1754944e-38, %v527
    %v529 = vsel %vm526, %v528, %v524
    %v530 = vmul.f32 1.0, %v529
    %v531 = vrcp.pop %v487
    %v532 = vmul.f32 %v487, %v531
    %v533 = vsub.f32 1.0, %v532
    %v534 = vmul.f32 %v531, %v533
    %v535 = vadd.f32 %v531, %v534
    %vm536 = vweird.f32 %v487
    %vm537 = vweird.f32 %v531
    %vm538 = vmor %vm536, %vm537
    %v539 = vsel %vm538, %v531, %v535
    %v540 = vand.u32 2147483647, %v487
    %vm541 = vcmp.eq.f32.partialorder %v540, 8.507059e+37
    %v542 = vand.u32 %v487, 2147483648
    %v543 = vor.u32 1.1754944e-38, %v542
    %v544 = vsel %vm541, %v543, %v539
    %v545 = vmul.f32 1.0, %v544
    %v546 = vrcp.pop %v488
    %v547 = vmul.f32 %v488, %v546
    %v548 = vsub.f32 1.0, %v547
    %v549 = vmul.f32 %v546, %v548
    %v550 = vadd.f32 %v546, %v549
    %vm551 = vweird.f32 %v488
    %vm552 = vweird.f32 %v546
    %vm553 = vmor %vm551, %vm552
    %v554 = vsel %vm553, %v546, %v550
    %v555 = vand.u32 2147483647, %v488
    %vm556 = vcmp.eq.f32.partialorder %v555, 8.507059e+37
    %v557 = vand.u32 %v488, 2147483648
    %v558 = vor.u32 1.1754944e-38, %v557
    %v559 = vsel %vm556, %v558, %v554
    %v560 = vmul.f32 1.0, %v559
    %v561 = vrcp.pop %v489
    %v562 = vmul.f32 %v489, %v561
    %v563 = vsub.f32 1.0, %v562
    %v564 = vmul.f32 %v561, %v563
    %v565 = vadd.f32 %v561, %v564
    %vm566 = vweird.f32 %v489
    %vm567 = vweird.f32 %v561
    %vm568 = vmor %vm566, %vm567
    %v569 = vsel %vm568, %v561, %v565
    %v570 = vand.u32 2147483647, %v489
    %vm571 = vcmp.eq.f32.partialorder %v570, 8.507059e+37
    %v572 = vand.u32 %v489, 2147483648
    %v573 = vor.u32 1.1754944e-38, %v572
    %v574 = vsel %vm571, %v573, %v569
    %v575 = vmul.f32 1.0, %v574
    %v576 = vrcp.pop %v490
    %v577 = vmul.f32 %v490, %v576
    %v578 = vsub.f32 1.0, %v577
    %v579 = vmul.f32 %v576, %v578
    %v580 = vadd.f32 %v576, %v579
    %vm581 = vweird.f32 %v490
    %vm582 = vweird.f32 %v576
    %vm583 = vmor %vm581, %vm582
    %v584 = vsel %vm583, %v576, %v580
    %v585 = vand.u32 2147483647, %v490
    %vm586 = vcmp.eq.f32.partialorder %v585, 8.507059e+37
    %v587 = vand.u32 %v490, 2147483648
    %v588 = vor.u32 1.1754944e-38, %v587
    %v589 = vsel %vm586, %v588, %v584
    %v590 = vmul.f32 1.0, %v589
    %v591 = vrcp.pop %v491
    %v592 = vmul.f32 %v491, %v591
    %v593 = vsub.f32 1.0, %v592
    %v594 = vmul.f32 %v591, %v593
    %v595 = vadd.f32 %v591, %v594
    %vm596 = vweird.f32 %v491
    %vm597 = vweird.f32 %v591
    %vm598 = vmor %vm596, %vm597
    %v599 = vsel %vm598, %v591, %v595
    %v600 = vand.u32 2147483647, %v491
    %vm601 = vcmp.eq.f32.partialorder %v600, 8.507059e+37
    %v602 = vand.u32 %v491, 2147483648
    %v603 = vor.u32 1.1754944e-38, %v602
    %v604 = vsel %vm601, %v603, %v599
    %v605 = vmul.f32 1.0, %v604
    %v606 = vrcp.pop %v492
    %v607 = vmul.f32 %v492, %v606
    %v608 = vsub.f32 1.0, %v607
    %v609 = vmul.f32 %v606, %v608
    %v610 = vadd.f32 %v606, %v609
    %vm611 = vweird.f32 %v492
    %vm612 = vweird.f32 %v606
    %vm613 = vmor %vm611, %vm612
    %v614 = vsel %vm613, %v606, %v610
    %v615 = vand.u32 2147483647, %v492
    %vm616 = vcmp.eq.f32.partialorder %v615, 8.507059e+37
    %v617 = vand.u32 %v492, 2147483648
    %v618 = vor.u32 1.1754944e-38, %v617
    %v619 = vsel %vm616, %v618, %v614
    %v620 = vmul.f32 1.0, %v619
    %v621 = vrcp.pop %v493
    %v622 = vmul.f32 %v493, %v621
    %v623 = vsub.f32 1.0, %v622
    %v624 = vmul.f32 %v621, %v623
    %v625 = vadd.f32 %v621, %v624
    %vm626 = vweird.f32 %v493
    %vm627 = vweird.f32 %v621
    %vm628 = vmor %vm626, %vm627
    %v629 = vsel %vm628, %v621, %v625
    %v630 = vand.u32 2147483647, %v493
    %vm631 = vcmp.eq.f32.partialorder %v630, 8.507059e+37
    %v632 = vand.u32 %v493, 2147483648
    %v633 = vor.u32 1.1754944e-38, %v632
    %v634 = vsel %vm631, %v633, %v629
    %v635 = vmul.f32 1.0, %v634
    %v636 = vrcp.pop %v494
    %v637 = vmul.f32 %v494, %v636
    %v638 = vsub.f32 1.0, %v637
    %v639 = vmul.f32 %v636, %v638
    %v640 = vadd.f32 %v636, %v639
    %vm641 = vweird.f32 %v494
    %vm642 = vweird.f32 %v636
    %vm643 = vmor %vm641, %vm642
    %v644 = vsel %vm643, %v636, %v640
    %v645 = vand.u32 2147483647, %v494
    %vm646 = vcmp.eq.f32.partialorder %v645, 8.507059e+37
    %v647 = vand.u32 %v494, 2147483648
    %v648 = vor.u32 1.1754944e-38, %v647
    %v649 = vsel %vm646, %v648, %v644
    %v650 = vmul.f32 1.0, %v649
    %v651 = vrcp.pop %v495
    %v652 = vmul.f32 %v495, %v651
    %v653 = vsub.f32 1.0, %v652
    %v654 = vmul.f32 %v651, %v653
    %v655 = vadd.f32 %v651, %v654
    %vm656 = vweird.f32 %v495
    %vm657 = vweird.f32 %v651
    %vm658 = vmor %vm656, %vm657
    %v659 = vsel %vm658, %v651, %v655
    %v660 = vand.u32 2147483647, %v495
    %vm661 = vcmp.eq.f32.partialorder %v660, 8.507059e+37
    %v662 = vand.u32 %v495, 2147483648
    %v663 = vor.u32 1.1754944e-38, %v662
    %v664 = vsel %vm661, %v663, %v659
    %v665 = vmul.f32 1.0, %v664
    %v666 = vrcp.pop %v496
    %v667 = vmul.f32 %v496, %v666
    %v668 = vsub.f32 1.0, %v667
    %v669 = vmul.f32 %v666, %v668
    %v670 = vadd.f32 %v666, %v669
    %vm671 = vweird.f32 %v496
    %vm672 = vweird.f32 %v666
    %vm673 = vmor %vm671, %vm672
    %v674 = vsel %vm673, %v666, %v670
    %v675 = vand.u32 2147483647, %v496
    %vm676 = vcmp.eq.f32.partialorder %v675, 8.507059e+37
    %v677 = vand.u32 %v496, 2147483648
    %v678 = vor.u32 1.1754944e-38, %v677
    %v679 = vsel %vm676, %v678, %v674
    %v680 = vmul.f32 1.0, %v679
    %v681 = vrcp.pop %v497
    %v682 = vmul.f32 %v497, %v681
    %v683 = vsub.f32 1.0, %v682
    %v684 = vmul.f32 %v681, %v683
    %v685 = vadd.f32 %v681, %v684
    %vm686 = vweird.f32 %v497
    %vm687 = vweird.f32 %v681
    %vm688 = vmor %vm686, %vm687
    %v689 = vsel %vm688, %v681, %v685
    %v690 = vand.u32 2147483647, %v497
    %vm691 = vcmp.eq.f32.partialorder %v690, 8.507059e+37
    %v692 = vand.u32 %v497, 2147483648
    %v693 = vor.u32 1.1754944e-38, %v692
    %v694 = vsel %vm691, %v693, %v689
    %v695 = vmul.f32 1.0, %v694
    %v696 = vrcp.pop %v498
    %v697 = vmul.f32 %v498, %v696
    %v698 = vsub.f32 1.0, %v697
    %v699 = vmul.f32 %v696, %v698
    %v700 = vadd.f32 %v696, %v699
    %vm701 = vweird.f32 %v498
    %vm702 = vweird.f32 %v696
    %vm703 = vmor %vm701, %vm702
    %v704 = vsel %vm703, %v696, %v700
    %v705 = vand.u32 2147483647, %v498
    %vm706 = vcmp.eq.f32.partialorder %v705, 8.507059e+37
    %v707 = vand.u32 %v498, 2147483648
    %v708 = vor.u32 1.1754944e-38, %v707
    %v709 = vsel %vm706, %v708, %v704
    %v710 = vmul.f32 1.0, %v709
    %v711 = vrcp.pop %v499
    %v712 = vmul.f32 %v499, %v711
    %v713 = vsub.f32 1.0, %v712
    %v714 = vmul.f32 %v711, %v713
    %v715 = vadd.f32 %v711, %v714
    %vm716 = vweird.f32 %v499
    %vm717 = vweird.f32 %v711
    %vm718 = vmor %vm716, %vm717
    %v719 = vsel %vm718, %v711, %v715
    %v720 = vand.u32 2147483647, %v499
    %vm721 = vcmp.eq.f32.partialorder %v720, 8.507059e+37
    %v722 = vand.u32 %v499, 2147483648
    %v723 = vor.u32 1.1754944e-38, %v722
    %v724 = vsel %vm721, %v723, %v719
    %v725 = vmul.f32 1.0, %v724
    %v726 = vrcp.pop %v500
    %v727 = vmul.f32 %v500, %v726
    %v728 = vsub.f32 1.0, %v727
    %v729 = vmul.f32 %v726, %v728
    %v730 = vadd.f32 %v726, %v729
    %vm731 = vweird.f32 %v500
    %vm732 = vweird.f32 %v726
    %vm733 = vmor %vm731, %vm732
    %v734 = vsel %vm733, %v726, %v730
    %v735 = vand.u32 2147483647, %v500
    %vm736 = vcmp.eq.f32.partialorder %v735, 8.507059e+37
    %v737 = vand.u32 %v500, 2147483648
    %v738 = vor.u32 1.1754944e-38, %v737
    %v739 = vsel %vm736, %v738, %v734
    %v740 = vmul.f32 1.0, %v739
    %v741 = vadd.f32 %v59, %v333
    %v742 = vadd.f32 %v62, %v335
    %v743 = vadd.f32 %v65, %v338
    %v744 = vadd.f32 %v68, %v340
    %v745 = vadd.f32 %v71, %v343
    %v746 = vadd.f32 %v74, %v345
    %v747 = vadd.f32 %v77, %v348
    %v748 = vadd.f32 %v80, %v350
    %v749 = vadd.f32 %v83, %v353
    %v750 = vadd.f32 %v86, %v355
    %v751 = vadd.f32 %v89, %v358
    %v752 = vadd.f32 %v92, %v360
    %v753 = vadd.f32 %v95, %v363
    %v754 = vadd.f32 %v98, %v365
    %v755 = vadd.f32 %v101, %v368
    %v756 = vadd.f32 %v104, %v370
    %v757 = vxor.u32 %v741, 2147483648
    %v758 = vxor.u32 %v742, 2147483648
    %v759 = vxor.u32 %v743, 2147483648
    %v760 = vxor.u32 %v744, 2147483648
    %v761 = vxor.u32 %v745, 2147483648
    %v762 = vxor.u32 %v746, 2147483648
    %v763 = vxor.u32 %v747, 2147483648
    %v764 = vxor.u32 %v748, 2147483648
    %v765 = vxor.u32 %v749, 2147483648
    %v766 = vxor.u32 %v750, 2147483648
    %v767 = vxor.u32 %v751, 2147483648
    %v768 = vxor.u32 %v752, 2147483648
    %v769 = vxor.u32 %v753, 2147483648
    %v770 = vxor.u32 %v754, 2147483648
    %v771 = vxor.u32 %v755, 2147483648
    %v772 = vxor.u32 %v756, 2147483648
    %v773 = vmul.f32 %v757, 1.442695
    %v774 = vpow.pop %v773
    %v775 = vmul.f32 %v758, 1.442695
    %v776 = vpow.pop %v775
    %v777 = vmul.f32 %v759, 1.442695
    %v778 = vpow.pop %v777
    %v779 = vmul.f32 %v760, 1.442695
    %v780 = vpow.pop %v779
    %v781 = vmul.f32 %v761, 1.442695
    %v782 = vpow.pop %v781
    %v783 = vmul.f32 %v762, 1.442695
    %v784 = vpow.pop %v783
    %v785 = vmul.f32 %v763, 1.442695
    %v786 = vpow.pop %v785
    %v787 = vmul.f32 %v764, 1.442695
    %v788 = vpow.pop %v787
    %v789 = vmul.f32 %v765, 1.442695
    %v790 = vpow.pop %v789
    %v791 = vmul.f32 %v766, 1.442695
    %v792 = vpow.pop %v791
    %v793 = vmul.f32 %v767, 1.442695
    %v794 = vpow.pop %v793
    %v795 = vmul.f32 %v768, 1.442695
    %v796 = vpow.pop %v795
    %v797 = vmul.f32 %v769, 1.442695
    %v798 = vpow.pop %v797
    %v799 = vmul.f32 %v770, 1.442695
    %v800 = vpow.pop %v799
    %v801 = vmul.f32 %v771, 1.442695
    %v802 = vpow.pop %v801
    %v803 = vmul.f32 %v772, 1.442695
    %v804 = vpow.pop %v803
    %v805 = vadd.f32 %v774, 1.0
    %v806 = vadd.f32 %v776, 1.0
    %v807 = vadd.f32 %v778, 1.0
    %v808 = vadd.f32 %v780, 1.0
    %v809 = vadd.f32 %v782, 1.0
    %v810 = vadd.f32 %v784, 1.0
    %v811 = vadd.f32 %v786, 1.0
    %v812 = vadd.f32 %v788, 1.0
    %v813 = vadd.f32 %v790, 1.0
    %v814 = vadd.f32 %v792, 1.0
    %v815 = vadd.f32 %v794, 1.0
    %v816 = vadd.f32 %v796, 1.0
    %v817 = vadd.f32 %v798, 1.0
    %v818 = vadd.f32 %v800, 1.0
    %v819 = vadd.f32 %v802, 1.0
    %v820 = vadd.f32 %v804, 1.0
    %v821 = vrcp.pop %v805
    %v822 = vmul.f32 %v805, %v821
    %v823 = vsub.f32 1.0, %v822
    %v824 = vmul.f32 %v821, %v823
    %v825 = vadd.f32 %v821, %v824
    %vm826 = vweird.f32 %v805
    %vm827 = vweird.f32 %v821
    %vm828 = vmor %vm826, %vm827
    %v829 = vsel %vm828, %v821, %v825
    %v830 = vand.u32 2147483647, %v805
    %vm831 = vcmp.eq.f32.partialorder %v830, 8.507059e+37
    %v832 = vand.u32 %v805, 2147483648
    %v833 = vor.u32 1.1754944e-38, %v832
    %v834 = vsel %vm831, %v833, %v829
    %v835 = vmul.f32 1.0, %v834
    %v836 = vrcp.pop %v806
    %v837 = vmul.f32 %v806, %v836
    %v838 = vsub.f32 1.0, %v837
    %v839 = vmul.f32 %v836, %v838
    %v840 = vadd.f32 %v836, %v839
    %vm841 = vweird.f32 %v806
    %vm842 = vweird.f32 %v836
    %vm843 = vmor %vm841, %vm842
    %v844 = vsel %vm843, %v836, %v840
    %v845 = vand.u32 2147483647, %v806
    %vm846 = vcmp.eq.f32.partialorder %v845, 8.507059e+37
    %v847 = vand.u32 %v806, 2147483648
    %v848 = vor.u32 1.1754944e-38, %v847
    %v849 = vsel %vm846, %v848, %v844
    %v850 = vmul.f32 1.0, %v849
    %v851 = vrcp.pop %v807
    %v852 = vmul.f32 %v807, %v851
    %v853 = vsub.f32 1.0, %v852
    %v854 = vmul.f32 %v851, %v853
    %v855 = vadd.f32 %v851, %v854
    %vm856 = vweird.f32 %v807
    %vm857 = vweird.f32 %v851
    %vm858 = vmor %vm856, %vm857
    %v859 = vsel %vm858, %v851, %v855
    %v860 = vand.u32 2147483647, %v807
    %vm861 = vcmp.eq.f32.partialorder %v860, 8.507059e+37
    %v862 = vand.u32 %v807, 2147483648
    %v863 = vor.u32 1.1754944e-38, %v862
    %v864 = vsel %vm861, %v863, %v859
    %v865 = vmul.f32 1.0, %v864
    %v866 = vrcp.pop %v808
    %v867 = vmul.f32 %v808, %v866
    %v868 = vsub.f32 1.0, %v867
    %v869 = vmul.f32 %v866, %v868
    %v870 = vadd.f32 %v866, %v869
    %vm871 = vweird.f32 %v808
    %vm872 = vweird.f32 %v866
    %vm873 = vmor %vm871, %vm872
    %v874 = vsel %vm873, %v866, %v870
    %v875 = vand.u32 2147483647, %v808
    %vm876 = vcmp.eq.f32.partialorder %v875, 8.507059e+37
    %v877 = vand.u32 %v808, 2147483648
    %v878 = vor.u32 1.1754944e-38, %v877
    %v879 = vsel %vm876, %v878, %v874
    %v880 = vmul.f32 1.0, %v879
    %v881 = vrcp.pop %v809
    %v882 = vmul.f32 %v809, %v881
    %v883 = vsub.f32 1.0, %v882
    %v884 = vmul.f32 %v881, %v883
    %v885 = vadd.f32 %v881, %v884
    %vm886 = vweird.f32 %v809
    %vm887 = vweird.f32 %v881
    %vm888 = vmor %vm886, %vm887
    %v889 = vsel %vm888, %v881, %v885
    %v890 = vand.u32 2147483647, %v809
    %vm891 = vcmp.eq.f32.partialorder %v890, 8.507059e+37
    %v892 = vand.u32 %v809, 2147483648
    %v893 = vor.u32 1.1754944e-38, %v892
    %v894 = vsel %vm891, %v893, %v889
    %v895 = vmul.f32 1.0, %v894
    %v896 = vrcp.pop %v810
    %v897 = vmul.f32 %v810, %v896
    %v898 = vsub.f32 1.0, %v897
    %v899 = vmul.f32 %v896, %v898
    %v900 = vadd.f32 %v896, %v899
    %vm901 = vweird.f32 %v810
    %vm902 = vweird.f32 %v896
    %vm903 = vmor %vm901, %vm902
    %v904 = vsel %vm903, %v896, %v900
    %v905 = vand.u32 2147483647, %v810
    %vm906 = vcmp.eq.f32.partialorder %v905, 8.507059e+37
    %v907 = vand.u32 %v810, 2147483648
    %v908 = vor.u32 1.1754944e-38, %v907
    %v909 = vsel %vm906, %v908, %v904
    %v910 = vmul.f32 1.0, %v909
    %v911 = vrcp.pop %v811
    %v912 = vmul.f32 %v811, %v911
    %v913 = vsub.f32 1.0, %v912
    %v914 = vmul.f32 %v911, %v913
    %v915 = vadd.f32 %v911, %v914
    %vm916 = vweird.f32 %v811
    %vm917 = vweird.f32 %v911
    %vm918 = vmor %vm916, %vm917
    %v919 = vsel %vm918, %v911, %v915
    %v920 = vand.u32 2147483647, %v811
    %vm921 = vcmp.eq.f32.partialorder %v920, 8.507059e+37
    %v922 = vand.u32 %v811, 2147483648
    %v923 = vor.u32 1.1754944e-38, %v922
    %v924 = vsel %vm921, %v923, %v919
    %v925 = vmul.f32 1.0, %v924
    %v926 = vrcp.pop %v812
    %v927 = vmul.f32 %v812, %v926
    %v928 = vsub.f32 1.0, %v927
    %v929 = vmul.f32 %v926, %v928
    %v930 = vadd.f32 %v926, %v929
    %vm931 = vweird.f32 %v812
    %vm932 = vweird.f32 %v926
    %vm933 = vmor %vm931, %vm932
    %v934 = vsel %vm933, %v926, %v930
    %v935 = vand.u32 2147483647, %v812
    %vm936 = vcmp.eq.f32.partialorder %v935, 8.507059e+37
    %v937 = vand.u32 %v812, 2147483648
    %v938 = vor.u32 1.1754944e-38, %v937
    %v939 = vsel %vm936, %v938, %v934
    %v940 = vmul.f32 1.0, %v939
    %v941 = vrcp.pop %v813
    %v942 = vmul.f32 %v813, %v941
    %v943 = vsub.f32 1.0, %v942
    %v944 = vmul.f32 %v941, %v943
    %v945 = vadd.f32 %v941, %v944
    %vm946 = vweird.f32 %v813
    %vm947 = vweird.f32 %v941
    %vm948 = vmor %vm946, %vm947
    %v949 = vsel %vm948, %v941, %v945
    %v950 = vand.u32 2147483647, %v813
    %vm951 = vcmp.eq.f32.partialorder %v950, 8.507059e+37
    %v952 = vand.u32 %v813, 2147483648
    %v953 = vor.u32 1.1754944e-38, %v952
    %v954 = vsel %vm951, %v953, %v949
    %v955 = vmul.f32 1.0, %v954
    %v956 = vrcp.pop %v814
    %v957 = vmul.f32 %v814, %v956
    %v958 = vsub.f32 1.0, %v957
    %v959 = vmul.f32 %v956, %v958
    %v960 = vadd.f32 %v956, %v959
    %vm961 = vweird.f32 %v814
    %vm962 = vweird.f32 %v956
    %vm963 = vmor %vm961, %vm962
    %v964 = vsel %vm963, %v956, %v960
    %v965 = vand.u32 2147483647, %v814
    %vm966 = vcmp.eq.f32.partialorder %v965, 8.507059e+37
    %v967 = vand.u32 %v814, 2147483648
    %v968 = vor.u32 1.1754944e-38, %v967
    %v969 = vsel %vm966, %v968, %v964
    %v970 = vmul.f32 1.0, %v969
    %v971 = vrcp.pop %v815
    %v972 = vmul.f32 %v815, %v971
    %v973 = vsub.f32 1.0, %v972
    %v974 = vmul.f32 %v971, %v973
    %v975 = vadd.f32 %v971, %v974
    %vm976 = vweird.f32 %v815
    %vm977 = vweird.f32 %v971
    %vm978 = vmor %vm976, %vm977
    %v979 = vsel %vm978, %v971, %v975
    %v980 = vand.u32 2147483647, %v815
    %vm981 = vcmp.eq.f32.partialorder %v980, 8.507059e+37
    %v982 = vand.u32 %v815, 2147483648
    %v983 = vor.u32 1.1754944e-38, %v982
    %v984 = vsel %vm981, %v983, %v979
    %v985 = vmul.f32 1.0, %v984
    %v986 = vrcp.pop %v816
    %v987 = vmul.f32 %v816, %v986
    %v988 = vsub.f32 1.0, %v987
    %v989 = vmul.f32 %v986, %v988
    %v990 = vadd.f32 %v986, %v989
    %vm991 = vweird.f32 %v816
    %vm992 = vweird.f32 %v986
    %vm993 = vmor %vm991, %vm992
    %v994 = vsel %vm993, %v986, %v990
    %v995 = vand.u32 2147483647, %v816
    %vm996 = vcmp.eq.f32.partialorder %v995, 8.507059e+37
    %v997 = vand.u32 %v816, 2147483648
    %v998 = vor.u32 1.1754944e-38, %v997
    %v999 = vsel %vm996, %v998, %v994
    %v1000 = vmul.f32 1.0, %v999
    %v1001 = vrcp.pop %v817
    %v1002 = vmul.f32 %v817, %v1001
    %v1003 = vsub.f32 1.0, %v1002
    %v1004 = vmul.f32 %v1001, %v1003
    %v1005 = vadd.f32 %v1001, %v1004
    %vm1006 = vweird.f32 %v817
    %vm1007 = vweird.f32 %v1001
    %vm1008 = vmor %vm1006, %vm1007
    %v1009 = vsel %vm1008, %v1001, %v1005
    %v1010 = vand.u32 2147483647, %v817
    %vm1011 = vcmp.eq.f32.partialorder %v1010, 8.507059e+37
    %v1012 = vand.u32 %v817, 2147483648
    %v1013 = vor.u32 1.1754944e-38, %v1012
    %v1014 = vsel %vm1011, %v1013, %v1009
    %v1015 = vmul.f32 1.0, %v1014
    %v1016 = vrcp.pop %v818
    %v1017 = vmul.f32 %v818, %v1016
    %v1018 = vsub.f32 1.0, %v1017
    %v1019 = vmul.f32 %v1016, %v1018
    %v1020 = vadd.f32 %v1016, %v1019
    %vm1021 = vweird.f32 %v818
    %vm1022 = vweird.f32 %v1016
    %vm1023 = vmor %vm1021, %vm1022
    %v1024 = vsel %vm1023, %v1016, %v1020
    %v1025 = vand.u32 2147483647, %v818
    %vm1026 = vcmp.eq.f32.partialorder %v1025, 8.507059e+37
    %v1027 = vand.u32 %v818, 2147483648
    %v1028 = vor.u32 1.1754944e-38, %v1027
    %v1029 = vsel %vm1026, %v1028, %v1024
    %v1030 = vmul.f32 1.0, %v1029
    %v1031 = vrcp.pop %v819
    %v1032 = vmul.f32 %v819, %v1031
    %v1033 = vsub.f32 1.0, %v1032
    %v1034 = vmul.f32 %v1031, %v1033
    %v1035 = vadd.f32 %v1031, %v1034
    %vm1036 = vweird.f32 %v819
    %vm1037 = vweird.f32 %v1031
    %vm1038 = vmor %vm1036, %vm1037
    %v1039 = vsel %vm1038, %v1031, %v1035
    %v1040 = vand.u32 2147483647, %v819
    %vm1041 = vcmp.eq.f32.partialorder %v1040, 8.507059e+37
    %v1042 = vand.u32 %v819, 2147483648
    %v1043 = vor.u32 1.1754944e-38, %v1042
    %v1044 = vsel %vm1041, %v1043, %v1039
    %v1045 = vmul.f32 1.0, %v1044
    %v1046 = vrcp.pop %v820
    %v1047 = vmul.f32 %v820, %v1046
    %v1048 = vsub.f32 1.0, %v1047
    %v1049 = vmul.f32 %v1046, %v1048
    %v1050 = vadd.f32 %v1046, %v1049
    %vm1051 = vweird.f32 %v820
    %vm1052 = vweird.f32 %v1046
    %vm1053 = vmor %vm1051, %vm1052
    %v1054 = vsel %vm1053, %v1046, %v1050
    %v1055 = vand.u32 2147483647, %v820
    %vm1056 = vcmp.eq.f32.partialorder %v1055, 8.507059e+37
    %v1057 = vand.u32 %v820, 2147483648
    %v1058 = vor.u32 1.1754944e-38, %v1057
    %v1059 = vsel %vm1056, %v1058, %v1054
    %v1060 = vmul.f32 1.0, %v1059
    %v1061 = vld [vmem:[%s2] sm:$0x1]
    %v1063 = vperm.slane %v1061, 0
    %v1065 = vadd.f32 %v382, %v1063
    %v1066 = vadd.f32 %v384, %v1063
    %v1067 = vadd.f32 %v387, %v1063
    %v1068 = vadd.f32 %v389, %v1063
    %v1069 = vadd.f32 %v392, %v1063
    %v1070 = vadd.f32 %v394, %v1063
    %v1071 = vadd.f32 %v397, %v1063
    %v1072 = vadd.f32 %v399, %v1063
    %v1073 = vadd.f32 %v402, %v1063
    %v1074 = vadd.f32 %v404, %v1063
    %v1075 = vadd.f32 %v407, %v1063
    %v1076 = vadd.f32 %v409, %v1063
    %v1077 = vadd.f32 %v412, %v1063
    %v1078 = vadd.f32 %v414, %v1063
    %v1079 = vadd.f32 %v417, %v1063
    %v1080 = vadd.f32 %v419, %v1063
    %v1081 = vmul.f32 %v515, %v1065
    %v1082 = vmul.f32 %v530, %v1066
    %v1083 = vmul.f32 %v545, %v1067
    %v1084 = vmul.f32 %v560, %v1068
    %v1085 = vmul.f32 %v575, %v1069
    %v1086 = vmul.f32 %v590, %v1070
    %v1087 = vmul.f32 %v605, %v1071
    %v1088 = vmul.f32 %v620, %v1072
    %v1089 = vmul.f32 %v635, %v1073
    %v1090 = vmul.f32 %v650, %v1074
    %v1091 = vmul.f32 %v665, %v1075
    %v1092 = vmul.f32 %v680, %v1076
    %v1093 = vmul.f32 %v695, %v1077
    %v1094 = vmul.f32 %v710, %v1078
    %v1095 = vmul.f32 %v725, %v1079
    %v1096 = vmul.f32 %v740, %v1080
    %v1097 = vadd.f32 %v60, %v1081
    %v1098 = vadd.f32 %v63, %v1082
    %v1099 = vadd.f32 %v66, %v1083
    %v1100 = vadd.f32 %v69, %v1084
    %v1101 = vadd.f32 %v72, %v1085
    %v1102 = vadd.f32 %v75, %v1086
    %v1103 = vadd.f32 %v78, %v1087
    %v1104 = vadd.f32 %v81, %v1088
    %v1105 = vadd.f32 %v84, %v1089
    %v1106 = vadd.f32 %v87, %v1090
    %v1107 = vadd.f32 %v90, %v1091
    %v1108 = vadd.f32 %v93, %v1092
    %v1109 = vadd.f32 %v96, %v1093
    %v1110 = vadd.f32 %v99, %v1094
    %v1111 = vadd.f32 %v102, %v1095
    %v1112 = vadd.f32 %v105, %v1096
    %v1113 = vtanh.pop %v1097
    %v1114 = vtanh.pop %v1098
    %v1115 = vtanh.pop %v1099
    %v1116 = vtanh.pop %v1100
    %v1117 = vtanh.pop %v1101
    %v1118 = vtanh.pop %v1102
    %v1119 = vtanh.pop %v1103
    %v1120 = vtanh.pop %v1104
    %v1121 = vtanh.pop %v1105
    %v1122 = vtanh.pop %v1106
    %v1123 = vtanh.pop %v1107
    %v1124 = vtanh.pop %v1108
    %v1125 = vtanh.pop %v1109
    %v1126 = vtanh.pop %v1110
    %v1127 = vtanh.pop %v1111
    %v1128 = vtanh.pop %v1112
    %v1129 = vsub.f32 1.0, %v835
    %v1130 = vsub.f32 1.0, %v850
    %v1131 = vsub.f32 1.0, %v865
    %v1132 = vsub.f32 1.0, %v880
    %v1133 = vsub.f32 1.0, %v895
    %v1134 = vsub.f32 1.0, %v910
    %v1135 = vsub.f32 1.0, %v925
    %v1136 = vsub.f32 1.0, %v940
    %v1137 = vsub.f32 1.0, %v955
    %v1138 = vsub.f32 1.0, %v970
    %v1139 = vsub.f32 1.0, %v985
    %v1140 = vsub.f32 1.0, %v1000
    %v1141 = vsub.f32 1.0, %v1015
    %v1142 = vsub.f32 1.0, %v1030
    %v1143 = vsub.f32 1.0, %v1045
    %v1144 = vsub.f32 1.0, %v1060
    %v1145 = vmul.f32 %v1129, %v1113
    %v1146 = vmul.f32 %v1130, %v1114
    %v1147 = vmul.f32 %v1131, %v1115
    %v1148 = vmul.f32 %v1132, %v1116
    %v1149 = vmul.f32 %v1133, %v1117
    %v1150 = vmul.f32 %v1134, %v1118
    %v1151 = vmul.f32 %v1135, %v1119
    %v1152 = vmul.f32 %v1136, %v1120
    %v1153 = vmul.f32 %v1137, %v1121
    %v1154 = vmul.f32 %v1138, %v1122
    %v1155 = vmul.f32 %v1139, %v1123
    %v1156 = vmul.f32 %v1140, %v1124
    %v1157 = vmul.f32 %v1141, %v1125
    %v1158 = vmul.f32 %v1142, %v1126
    %v1159 = vmul.f32 %v1143, %v1127
    %v1160 = vmul.f32 %v1144, %v1128
    %v1161 = vmul.f32 %v835, %v23
    %v1162 = vmul.f32 %v850, %v24
    %v1163 = vmul.f32 %v865, %v25
    %v1164 = vmul.f32 %v880, %v26
    %v1165 = vmul.f32 %v895, %v27
    %v1166 = vmul.f32 %v910, %v28
    %v1167 = vmul.f32 %v925, %v29
    %v1168 = vmul.f32 %v940, %v30
    %v1169 = vmul.f32 %v955, %v31
    %v1170 = vmul.f32 %v970, %v32
    %v1171 = vmul.f32 %v985, %v33
    %v1172 = vmul.f32 %v1000, %v34
    %v1173 = vmul.f32 %v1015, %v35
    %v1174 = vmul.f32 %v1030, %v36
    %v1175 = vmul.f32 %v1045, %v37
    %v1176 = vmul.f32 %v1060, %v38
    %v1177 = vadd.f32 %v1145, %v1161
    %v1178 = vadd.f32 %v1146, %v1162
    %v1179 = vadd.f32 %v1147, %v1163
    %v1180 = vadd.f32 %v1148, %v1164
    %v1181 = vadd.f32 %v1149, %v1165
    %v1182 = vadd.f32 %v1150, %v1166
    %v1183 = vadd.f32 %v1151, %v1167
    %v1184 = vadd.f32 %v1152, %v1168
    %v1185 = vadd.f32 %v1153, %v1169
    %v1186 = vadd.f32 %v1154, %v1170
    %v1187 = vadd.f32 %v1155, %v1171
    %v1188 = vadd.f32 %v1156, %v1172
    %v1189 = vadd.f32 %v1157, %v1173
    %v1190 = vadd.f32 %v1158, %v1174
    %v1191 = vadd.f32 %v1159, %v1175
    %v1192 = vadd.f32 %v1160, %v1176
    %v1193 = vld [vmem:[%s3] sm:$0xff]
    %v1194 = vld [vmem:[%s3 + $0x8] sm:$0xff]
    %v1195 = vld [vmem:[%s3 + $0x10] sm:$0xff]
    %v1196 = vld [vmem:[%s3 + $0x18] sm:$0xff]
    %v1197 = vld [vmem:[%s3 + $0x20] sm:$0xff]
    %v1198 = vld [vmem:[%s3 + $0x28] sm:$0xff]
    %v1199 = vld [vmem:[%s3 + $0x30] sm:$0xff]
    %v1200 = vld [vmem:[%s3 + $0x38] sm:$0xff]
    %v1201 = vld [vmem:[%s3 + $0x40] sm:$0xff]
    %v1202 = vld [vmem:[%s3 + $0x48] sm:$0xff]
    %v1203 = vld [vmem:[%s3 + $0x50] sm:$0xff]
    %v1204 = vld [vmem:[%s3 + $0x58] sm:$0xff]
    %v1205 = vld [vmem:[%s3 + $0x60] sm:$0xff]
    %v1206 = vld [vmem:[%s3 + $0x68] sm:$0xff]
    %v1207 = vld [vmem:[%s3 + $0x70] sm:$0xff]
    %v1208 = vld [vmem:[%s3 + $0x78] sm:$0xff]
    %v1209 = vstv %s18
    %vm1210 = vcmp.eq.s32.totalorder %v1193, %v1209
    %vm1211 = vcmp.eq.s32.totalorder %v1194, %v1209
    %vm1212 = vcmp.eq.s32.totalorder %v1195, %v1209
    %vm1213 = vcmp.eq.s32.totalorder %v1196, %v1209
    %vm1214 = vcmp.eq.s32.totalorder %v1197, %v1209
    %vm1215 = vcmp.eq.s32.totalorder %v1198, %v1209
    %vm1216 = vcmp.eq.s32.totalorder %v1199, %v1209
    %vm1217 = vcmp.eq.s32.totalorder %v1200, %v1209
    %vm1218 = vcmp.eq.s32.totalorder %v1201, %v1209
    %vm1219 = vcmp.eq.s32.totalorder %v1202, %v1209
    %vm1220 = vcmp.eq.s32.totalorder %v1203, %v1209
    %vm1221 = vcmp.eq.s32.totalorder %v1204, %v1209
    %vm1222 = vcmp.eq.s32.totalorder %v1205, %v1209
    %vm1223 = vcmp.eq.s32.totalorder %v1206, %v1209
    %vm1224 = vcmp.eq.s32.totalorder %v1207, %v1209
    %vm1225 = vcmp.eq.s32.totalorder %v1208, %v1209
    %v1226 = vsel %vm1210, 1, 0
    %v1227 = vsel %vm1211, 1, 0
    %v1228 = vsel %vm1212, 1, 0
    %v1229 = vsel %vm1213, 1, 0
    %v1230 = vsel %vm1214, 1, 0
    %v1231 = vsel %vm1215, 1, 0
    %v1232 = vsel %vm1216, 1, 0
    %v1233 = vsel %vm1217, 1, 0
    %v1234 = vsel %vm1218, 1, 0
    %v1235 = vsel %vm1219, 1, 0
    %v1236 = vsel %vm1220, 1, 0
    %v1237 = vsel %vm1221, 1, 0
    %v1238 = vsel %vm1222, 1, 0
    %v1239 = vsel %vm1223, 1, 0
    %v1240 = vsel %vm1224, 1, 0
    %v1241 = vsel %vm1225, 1, 0
    %1242 = vset.pattern.permute.xlu0 0
    %1243 = vperm.xlu0 %1242, %v1226
    %v1244 = vpop.permute.xlu0 %1243
    %1245 = vset.pattern.permute.xlu0 0
    %1246 = vperm.xlu0 %1245, %v1227
    %v1247 = vpop.permute.xlu0 %1246
    %1248 = vset.pattern.permute.xlu0 0
    %1249 = vperm.xlu0 %1248, %v1228
    %v1250 = vpop.permute.xlu0 %1249
    %1251 = vset.pattern.permute.xlu0 0
    %1252 = vperm.xlu0 %1251, %v1229
    %v1253 = vpop.permute.xlu0 %1252
    %1254 = vset.pattern.permute.xlu0 0
    %1255 = vperm.xlu0 %1254, %v1230
    %v1256 = vpop.permute.xlu0 %1255
    %1257 = vset.pattern.permute.xlu0 0
    %1258 = vperm.xlu0 %1257, %v1231
    %v1259 = vpop.permute.xlu0 %1258
    %1260 = vset.pattern.permute.xlu0 0
    %1261 = vperm.xlu0 %1260, %v1232
    %v1262 = vpop.permute.xlu0 %1261
    %1263 = vset.pattern.permute.xlu0 0
    %1264 = vperm.xlu0 %1263, %v1233
    %v1265 = vpop.permute.xlu0 %1264
    %1266 = vset.pattern.permute.xlu0 0
    %1267 = vperm.xlu0 %1266, %v1234
    %v1268 = vpop.permute.xlu0 %1267
    %1269 = vset.pattern.permute.xlu0 0
    %1270 = vperm.xlu0 %1269, %v1235
    %v1271 = vpop.permute.xlu0 %1270
    %1272 = vset.pattern.permute.xlu0 0
    %1273 = vperm.xlu0 %1272, %v1236
    %v1274 = vpop.permute.xlu0 %1273
    %1275 = vset.pattern.permute.xlu0 0
    %1276 = vperm.xlu0 %1275, %v1237
    %v1277 = vpop.permute.xlu0 %1276
    %1278 = vset.pattern.permute.xlu0 0
    %1279 = vperm.xlu0 %1278, %v1238
    %v1280 = vpop.permute.xlu0 %1279
    %1281 = vset.pattern.permute.xlu0 0
    %1282 = vperm.xlu0 %1281, %v1239
    %v1283 = vpop.permute.xlu0 %1282
    %1284 = vset.pattern.permute.xlu0 0
    %1285 = vperm.xlu0 %1284, %v1240
    %v1286 = vpop.permute.xlu0 %1285
    %1287 = vset.pattern.permute.xlu0 0
    %1288 = vperm.xlu0 %1287, %v1241
    %v1289 = vpop.permute.xlu0 %1288
    %vm1290 = vcmp.eq.s32.totalorder %v1244, 1
    %vm1291 = vcmp.eq.s32.totalorder %v1247, 1
    %vm1292 = vcmp.eq.s32.totalorder %v1250, 1
    %vm1293 = vcmp.eq.s32.totalorder %v1253, 1
    %vm1294 = vcmp.eq.s32.totalorder %v1256, 1
    %vm1295 = vcmp.eq.s32.totalorder %v1259, 1
    %vm1296 = vcmp.eq.s32.totalorder %v1262, 1
    %vm1297 = vcmp.eq.s32.totalorder %v1265, 1
    %vm1298 = vcmp.eq.s32.totalorder %v1268, 1
    %vm1299 = vcmp.eq.s32.totalorder %v1271, 1
    %vm1300 = vcmp.eq.s32.totalorder %v1274, 1
    %vm1301 = vcmp.eq.s32.totalorder %v1277, 1
    %vm1302 = vcmp.eq.s32.totalorder %v1280, 1
    %vm1303 = vcmp.eq.s32.totalorder %v1283, 1
    %vm1304 = vcmp.eq.s32.totalorder %v1286, 1
    %vm1305 = vcmp.eq.s32.totalorder %v1289, 1
    %v1306 = vsel %vm1290, %v1177, %v39
    %v1307 = vsel %vm1291, %v1178, %v40
    %v1308 = vsel %vm1292, %v1179, %v41
    %v1309 = vsel %vm1293, %v1180, %v42
    %v1310 = vsel %vm1294, %v1181, %v43
    %v1311 = vsel %vm1295, %v1182, %v44
    %v1312 = vsel %vm1296, %v1183, %v45
    %v1313 = vsel %vm1297, %v1184, %v46
    %v1314 = vsel %vm1298, %v1185, %v47
    %v1315 = vsel %vm1299, %v1186, %v48
    %v1316 = vsel %vm1300, %v1187, %v49
    %v1317 = vsel %vm1301, %v1188, %v50
    %v1318 = vsel %vm1302, %v1189, %v51
    %v1319 = vsel %vm1303, %v1190, %v52
    %v1320 = vsel %vm1304, %v1191, %v53
    %v1321 = vsel %vm1305, %v1192, %v54
  $region22: #{gru_select_last.1} parent=0 // loop_footer
    %s22 = sadd.s32 1, %s18
  $region23: #{gru_select_last.1} parent=0 // loop_footer_branch
    %17 = sbr.rel target = $region19
  $region24: #{gru_select_last.1} parent=0 // loop_exit
    _
  %1322 = vst [vmem:[%s4] sm:$0xff] %v39
  %1323 = vst [vmem:[%s4 + $0x8] sm:$0xff] %v40
  %1324 = vst [vmem:[%s4 + $0x10] sm:$0xff] %v41
  %1325 = vst [vmem:[%s4 + $0x18] sm:$0xff] %v42
  %1326 = vst [vmem:[%s4 + $0x20] sm:$0xff] %v43
  %1327 = vst [vmem:[%s4 + $0x28] sm:$0xff] %v44
  %1328 = vst [vmem:[%s4 + $0x30] sm:$0xff] %v45
  %1329 = vst [vmem:[%s4 + $0x38] sm:$0xff] %v46
  %1330 = vst [vmem:[%s4 + $0x40] sm:$0xff] %v47
  %1331 = vst [vmem:[%s4 + $0x48] sm:$0xff] %v48
  %1332 = vst [vmem:[%s4 + $0x50] sm:$0xff] %v49
  %1333 = vst [vmem:[%s4 + $0x58] sm:$0xff] %v50
  %1334 = vst [vmem:[%s4 + $0x60] sm:$0xff] %v51
  %1335 = vst [vmem:[%s4 + $0x68] sm:$0xff] %v52
  %1336 = vst [vmem:[%s4 + $0x70] sm:$0xff] %v53
  %1337 = vst [vmem:[%s4 + $0x78] sm:$0xff] %v54
  // Predicated region
  $region25: #{gru_select_last.1} parent=0 // pred_check
    _
  $region26: #{gru_select_last.1} parent=0 // pred_check_branch
    %1339 = sbr.rel (0) target = $region28
  $region27: #{gru_select_last.1} parent=0 // pred_region
    _
  $region28: #{gru_select_last.1} parent=0 // pred_fallthru
    _
  // Predicated region
  $region29: #{gru_select_last.1} parent=0 // pred_check
    _
  $region30: #{gru_select_last.1} parent=0 // pred_check_branch
    %1341 = sbr.rel (0) target = $region32
  $region31: #{gru_select_last.1} parent=0 // pred_region
    _
  $region32: #{gru_select_last.1} parent=0 // pred_fallthru
    _

</llo_original>
